<compile_context>
chip_gen: v7x
topology: tpu7x:2x2x1
jax: 0.10.0
libtpu: 0.0.40
codegen_flags: <defaults>
</compile_context>

<pallas_src>
import jax
import jax.numpy as jnp
from jax.experimental import pallas as pl
from jax.experimental.pallas import tpu as pltpu


def _decoder_mlp_kernel(h_ref, xf_ref, w1h_ref, w1x_ref, b1_ref,
                        wloc_cv_ref, wloc_x_ref, b2_ref, out_ref):
    xf = xf_ref[...]
    # Global MLP (concat-free):  sigmoid(h @ W1h + xf @ W1x + b1)
    cv = (jnp.dot(h_ref[...], w1h_ref[...], preferred_element_type=jnp.float32)
          + jnp.dot(xf, w1x_ref[...], preferred_element_type=jnp.float32)
          + b1_ref[...])
    cv = jax.nn.sigmoid(cv)
    # Local MLP for all pred_long steps at once (block-diagonal / tiled weights).
    q = (jnp.dot(cv, wloc_cv_ref[...], preferred_element_type=jnp.float32)
         + jnp.dot(xf, wloc_x_ref[...], preferred_element_type=jnp.float32)
         + b2_ref[...])
    out_ref[...] = q.astype(out_ref.dtype)


def decoder_mlp_forward(hidden_states, x_future, params,
                        *, x_dim, hidden_size, context_size, num_quantiles,
                        pred_long, batch_tile=512):
    """Pallas implementation of Decoder_MLP.forward."""
    B = hidden_states.shape[0]
    C, P, Q, X = context_size, pred_long, num_quantiles, x_dim
    w1, b1, w2, b2 = params["w1"], params["b1"], params["w2"], params["b2"]

    # --- weight preparation (plain JAX, tiny, done once per call) -----------
    # Split W1 rows to match the removed concat(hidden, x_future_flat).
    w1h = w1[:hidden_size, :]                  # (hidden, C*(P+1))
    w1x = w1[hidden_size:, :]                  # (P*X,    C*(P+1))
    b1_2d = b1.reshape(1, -1)

    # Split W2 rows by concat(ck, ca, xk) structure, then build batched forms.
    w2c = w2[:C, :]                            # (C, Q)  ck rows
    w2a = w2[C:2 * C, :]                       # (C, Q)  ca rows
    w2x = w2[2 * C:, :]                        # (X, Q)  xk rows
    eye_p = jnp.eye(P, dtype=w2.dtype)
    w_loc_ck = jnp.kron(eye_p, w2c)            # (P*C, P*Q)  block-diagonal
    w_loc_ca = jnp.tile(w2a, (1, P))           # (C,   P*Q)  shared ca rows
    w_loc_cv = jnp.concatenate([w_loc_ck, w_loc_ca], axis=0)   # (C*(P+1), P*Q)
    w_loc_x = jnp.kron(eye_p, w2x)             # (P*X, P*Q)  block-diagonal
    b2_full = jnp.tile(b2.reshape(1, Q), (1, P))               # (1, P*Q)

    xf_flat = x_future.reshape(B, P * X)

    # --- grid / specs --------------------------------------------------------
    TB = B if B <= batch_tile else batch_tile
    grid = (pl.cdiv(B, TB),)
    din_cv = C * (P + 1)

    row_spec = lambda cols: pl.BlockSpec((TB, cols), lambda i: (i, 0))
    const_spec = lambda r, c: pl.BlockSpec((r, c), lambda i: (0, 0))

    out_flat = pl.pallas_call(
        _decoder_mlp_kernel,
        out_shape=jax.ShapeDtypeStruct((B, P * Q), jnp.float32),
        grid=grid,
        in_specs=[
            row_spec(hidden_size),             # hidden_states tile
            row_spec(P * X),                   # x_future (flat) tile
            const_spec(hidden_size, din_cv),   # W1h (resident)
            const_spec(P * X, din_cv),         # W1x (resident)
            const_spec(1, din_cv),             # b1
            const_spec(din_cv, P * Q),         # W_loc_cv (resident)
            const_spec(P * X, P * Q),          # W_loc_x  (resident)
            const_spec(1, P * Q),              # b2 (tiled)
        ],
        out_specs=row_spec(P * Q),
        compiler_params=pltpu.CompilerParams(
            dimension_semantics=("parallel",),
            vmem_limit_bytes=32 * 1024 * 1024,
        ),
    )(hidden_states, xf_flat, w1h, w1x, b1_2d, w_loc_cv, w_loc_x, b2_full)

    return out_flat.reshape(B, P, Q)


def init_params(key, *, x_dim, hidden_size, context_size, num_quantiles, pred_long):
    """Deterministic init matching Decoder_MLP.init_weights (normal(0,0.02), zero bias)."""
    k1, k2 = jax.random.split(key)
    din1 = hidden_size + x_dim * pred_long
    dout1 = context_size * (pred_long + 1)
    din2 = 2 * context_size + x_dim
    return {
        "w1": 0.02 * jax.random.normal(k1, (din1, dout1), dtype=jnp.float32),
        "b1": jnp.zeros((dout1,), dtype=jnp.float32),
        "w2": 0.02 * jax.random.normal(k2, (din2, num_quantiles), dtype=jnp.float32),
        "b2": jnp.zeros((num_quantiles,), dtype=jnp.float32),
    }


def reference_forward(hidden_states, x_future, params,
                      *, x_dim, hidden_size, context_size, num_quantiles, pred_long):
    """Pure-JAX reference mirroring the PyTorch forward exactly."""
    B = hidden_states.shape[0]
    x_future_1 = x_future.reshape(B, pred_long * x_dim)
    hx = jnp.concatenate([hidden_states, x_future_1], axis=1)
    cv = jax.nn.sigmoid(hx @ params["w1"] + params["b1"])
    ca = cv[:, context_size * pred_long:]
    results = []
    for k in range(pred_long):
        xk = x_future[:, k, :]
        ck = cv[:, k * context_size:(k + 1) * context_size]
        cak = jnp.concatenate([ck, ca, xk], axis=1)
        q = cak @ params["w2"] + params["b2"]
        results.append(q[:, None, :])
    return jnp.concatenate(results, axis=1)


if __name__ == "__main__":
    # small, forward-consistent shapes
    B = 2
    x_dim = 4
    hidden_size = 32
    context_size = 16
    num_quantiles = 5
    pred_long = 8

    hp = dict(x_dim=x_dim, hidden_size=hidden_size, context_size=context_size,
              num_quantiles=num_quantiles, pred_long=pred_long)

    key = jax.random.PRNGKey(0)
    kp, kh, kx = jax.random.split(key, 3)
    params = init_params(kp, **hp)
    hidden_states = jax.random.normal(kh, (B, hidden_size), dtype=jnp.float32)
    x_future = jax.random.normal(kx, (B, pred_long, x_dim), dtype=jnp.float32)

    out = decoder_mlp_forward(hidden_states, x_future, params, **hp)
    out = jax.block_until_ready(out)

    ref = reference_forward(hidden_states, x_future, params, **hp)
    assert out.shape == (B, pred_long, num_quantiles)
    assert jnp.allclose(out, ref, atol=1e-5, rtol=1e-5), "mismatch vs reference"

    print("KERNEL_OK")
</pallas_src>

<mosaic_0001>
module attributes {stable_mosaic.version = 11 : i64} {
  func.func @_decoder_mlp_kernel(%arg0: i32, %arg1: memref<2x32xf32, #tpu.memory_space<vmem>>, %arg2: memref<2x32xf32, #tpu.memory_space<vmem>>, %arg3: memref<32x144xf32, #tpu.memory_space<vmem>>, %arg4: memref<32x144xf32, #tpu.memory_space<vmem>>, %arg5: memref<1x144xf32, #tpu.memory_space<vmem>>, %arg6: memref<144x40xf32, #tpu.memory_space<vmem>>, %arg7: memref<32x40xf32, #tpu.memory_space<vmem>>, %arg8: memref<1x40xf32, #tpu.memory_space<vmem>>, %arg9: memref<2x40xf32, #tpu.memory_space<vmem>>) attributes {dimension_semantics = [#tpu.dimension_semantics<parallel>], iteration_bounds = array<i64: 1>, scalar_prefetch = 0 : i64, scratch_operands = 0 : i64, tpu.core_type = #tpu.core_type<tc>, window_params = [{transform_indices = @transform_0, window_bounds = array<i64: 2, 32>}, {transform_indices = @transform_1, window_bounds = array<i64: 2, 32>}, {pipeline_mode = #tpu.pipeline_mode<synchronous>, transform_indices = @transform_2, window_bounds = array<i64: 32, 144>}, {pipeline_mode = #tpu.pipeline_mode<synchronous>, transform_indices = @transform_3, window_bounds = array<i64: 32, 144>}, {pipeline_mode = #tpu.pipeline_mode<synchronous>, transform_indices = @transform_4, window_bounds = array<i64: 1, 144>}, {pipeline_mode = #tpu.pipeline_mode<synchronous>, transform_indices = @transform_5, window_bounds = array<i64: 144, 40>}, {pipeline_mode = #tpu.pipeline_mode<synchronous>, transform_indices = @transform_6, window_bounds = array<i64: 32, 40>}, {pipeline_mode = #tpu.pipeline_mode<synchronous>, transform_indices = @transform_7, window_bounds = array<i64: 1, 40>}, {transform_indices = @transform_8, window_bounds = array<i64: 2, 40>}]} {
    %c0 = arith.constant 0 : index
    %c0_0 = arith.constant 0 : index
    %0 = vector.load %arg2[%c0, %c0_0] : memref<2x32xf32, #tpu.memory_space<vmem>>, vector<2x32xf32>
    %c0_1 = arith.constant 0 : index
    %c0_2 = arith.constant 0 : index
    %1 = vector.load %arg1[%c0_1, %c0_2] : memref<2x32xf32, #tpu.memory_space<vmem>>, vector<2x32xf32>
    %c0_3 = arith.constant 0 : index
    %c0_4 = arith.constant 0 : index
    %2 = vector.load %arg3[%c0_3, %c0_4] : memref<32x144xf32, #tpu.memory_space<vmem>>, vector<32x144xf32>
    %cst = arith.constant dense<0.000000e+00> : vector<2x144xf32>
    %3 = tpu.matmul %1, %2, %cst {dimension_numbers = #tpu.dot_dimension_numbers<[1], [0], [0], [1], [0, 0, 1, 1], [], []>} : vector<2x32xf32>, vector<32x144xf32>, vector<2x144xf32> -> vector<2x144xf32>
    %c0_5 = arith.constant 0 : index
    %c0_6 = arith.constant 0 : index
    %4 = vector.load %arg4[%c0_5, %c0_6] : memref<32x144xf32, #tpu.memory_space<vmem>>, vector<32x144xf32>
    %cst_7 = arith.constant dense<0.000000e+00> : vector<2x144xf32>
    %5 = tpu.matmul %0, %4, %cst_7 {dimension_numbers = #tpu.dot_dimension_numbers<[1], [0], [0], [1], [0, 0, 1, 1], [], []>} : vector<2x32xf32>, vector<32x144xf32>, vector<2x144xf32> -> vector<2x144xf32>
    %6 = arith.addf %3, %5 : vector<2x144xf32>
    %c0_8 = arith.constant 0 : index
    %c0_9 = arith.constant 0 : index
    %7 = vector.load %arg5[%c0_8, %c0_9] : memref<1x144xf32, #tpu.memory_space<vmem>>, vector<1x144xf32>
    %8 = vector.broadcast %7 : vector<1x144xf32> to vector<2x144xf32>
    %9 = arith.addf %6, %8 : vector<2x144xf32>
    %10 = arith.negf %9 : vector<2x144xf32>
    %11 = math.exp %10 : vector<2x144xf32>
    %cst_10 = arith.constant 1.000000e+00 : f32
    %12 = vector.broadcast %cst_10 : f32 to vector<2x144xf32>
    %13 = arith.addf %12, %11 : vector<2x144xf32>
    %14 = arith.divf %12, %13 : vector<2x144xf32>
    %c0_11 = arith.constant 0 : index
    %c0_12 = arith.constant 0 : index
    %15 = vector.load %arg6[%c0_11, %c0_12] : memref<144x40xf32, #tpu.memory_space<vmem>>, vector<144x40xf32>
    %cst_13 = arith.constant dense<0.000000e+00> : vector<2x40xf32>
    %16 = tpu.matmul %14, %15, %cst_13 {dimension_numbers = #tpu.dot_dimension_numbers<[1], [0], [0], [1], [0, 0, 1, 1], [], []>} : vector<2x144xf32>, vector<144x40xf32>, vector<2x40xf32> -> vector<2x40xf32>
    %c0_14 = arith.constant 0 : index
    %c0_15 = arith.constant 0 : index
    %17 = vector.load %arg7[%c0_14, %c0_15] : memref<32x40xf32, #tpu.memory_space<vmem>>, vector<32x40xf32>
    %cst_16 = arith.constant dense<0.000000e+00> : vector<2x40xf32>
    %18 = tpu.matmul %0, %17, %cst_16 {dimension_numbers = #tpu.dot_dimension_numbers<[1], [0], [0], [1], [0, 0, 1, 1], [], []>} : vector<2x32xf32>, vector<32x40xf32>, vector<2x40xf32> -> vector<2x40xf32>
    %19 = arith.addf %16, %18 : vector<2x40xf32>
    %c0_17 = arith.constant 0 : index
    %c0_18 = arith.constant 0 : index
    %20 = vector.load %arg8[%c0_17, %c0_18] : memref<1x40xf32, #tpu.memory_space<vmem>>, vector<1x40xf32>
    %21 = vector.broadcast %20 : vector<1x40xf32> to vector<2x40xf32>
    %22 = arith.addf %19, %21 : vector<2x40xf32>
    %c0_19 = arith.constant 0 : index
    %c0_20 = arith.constant 0 : index
    %23 = vector.load %arg9[%c0_19, %c0_20] : memref<2x40xf32, #tpu.memory_space<vmem>>, vector<2x40xf32>
    tpu.vector_store %arg9[%c0_19, %c0_20], %22 {strides = array<i32>} : memref<2x40xf32, #tpu.memory_space<vmem>>, vector<2x40xf32>,
    return
  }
  func.func @transform_0(%arg0: i32) -> (i32, i32) {
    %c0_i32 = arith.constant 0 : i32
    %c0_i32_0 = arith.constant 0 : i32
    return %arg0, %c0_i32 : i32, i32
  }
  func.func @transform_1(%arg0: i32) -> (i32, i32) {
    %c0_i32 = arith.constant 0 : i32
    %c0_i32_0 = arith.constant 0 : i32
    return %arg0, %c0_i32 : i32, i32
  }
  func.func @transform_2(%arg0: i32) -> (i32, i32) {
    %c0_i32 = arith.constant 0 : i32
    %c0_i32_0 = arith.constant 0 : i32
    %c0_i32_1 = arith.constant 0 : i32
    return %c0_i32, %c0_i32_0 : i32, i32
  }
  func.func @transform_3(%arg0: i32) -> (i32, i32) {
    %c0_i32 = arith.constant 0 : i32
    %c0_i32_0 = arith.constant 0 : i32
    %c0_i32_1 = arith.constant 0 : i32
    return %c0_i32, %c0_i32_0 : i32, i32
  }
  func.func @transform_4(%arg0: i32) -> (i32, i32) {
    %c0_i32 = arith.constant 0 : i32
    %c0_i32_0 = arith.constant 0 : i32
    %c0_i32_1 = arith.constant 0 : i32
    return %c0_i32, %c0_i32_0 : i32, i32
  }
  func.func @transform_5(%arg0: i32) -> (i32, i32) {
    %c0_i32 = arith.constant 0 : i32
    %c0_i32_0 = arith.constant 0 : i32
    %c0_i32_1 = arith.constant 0 : i32
    return %c0_i32, %c0_i32_0 : i32, i32
  }
  func.func @transform_6(%arg0: i32) -> (i32, i32) {
    %c0_i32 = arith.constant 0 : i32
    %c0_i32_0 = arith.constant 0 : i32
    %c0_i32_1 = arith.constant 0 : i32
    return %c0_i32, %c0_i32_0 : i32, i32
  }
  func.func @transform_7(%arg0: i32) -> (i32, i32) {
    %c0_i32 = arith.constant 0 : i32
    %c0_i32_0 = arith.constant 0 : i32
    %c0_i32_1 = arith.constant 0 : i32
    return %c0_i32, %c0_i32_0 : i32, i32
  }
  func.func @transform_8(%arg0: i32) -> (i32, i32) {
    %c0_i32 = arith.constant 0 : i32
    %c0_i32_0 = arith.constant 0 : i32
    return %arg0, %c0_i32 : i32, i32
  }
}

</mosaic_0001>

<llo_original>
// kernel: tpu_custom_call.1
$region0: #{tpu_custom_call.1}
  #allocation0 [shape = 'u32[]', space=smem, size = 0x4, offset = 0x4, fixed_abs, tag = 'smem constant byte address 0x4 - core index']
  #allocation1 [shape = 'u32[144,128]{1,0:T(1,128)}', space=vmem, size = 0x12000, scoped, tag = 'internal scratch']
  %s0 = inlined_call_operand.vmem [shape: f32[2,32], index: 0, kind: input, shape index: {}]
  %s1 = inlined_call_operand.vmem [shape: f32[2,32], index: 1, kind: input, shape index: {}]
  %s2 = inlined_call_operand.vmem [shape: f32[32,144], index: 2, kind: input, shape index: {}]
  %s3 = inlined_call_operand.vmem [shape: f32[32,144], index: 3, kind: input, shape index: {}]
  %s4 = inlined_call_operand.vmem [shape: f32[1,144], index: 4, kind: input, shape index: {}]
  %s5 = inlined_call_operand.vmem [shape: f32[144,40], index: 5, kind: input, shape index: {}]
  %s6 = inlined_call_operand.vmem [shape: f32[32,40], index: 6, kind: input, shape index: {}]
  %s7 = inlined_call_operand.vmem [shape: f32[1,40], index: 7, kind: input, shape index: {}]
  %s8 = inlined_call_operand.hbm [shape: f32[2,40], index: 8, kind: output, shape index: {}]
  %s9 = sld [smem:[#allocation0]]
  $region42: #{tpu_custom_call.1} parent=0
    _
  %s11 = ssub.s32 1, %s9
  %s12 = scalar_select 0, %s11, %s9
  $region1: #{tpu_custom_call.1} parent=0
    #allocation2 [shape = 'u8[1024]{0}', space=vmem, size = 0x400, scoped, tag = 'output window, operand 0, single buffered']
    #allocation3 [shape = 's32[1]{0}', space=sflag, size = 0x4, scoped, tag = 'scoped memory for tpu_custom_call.1']
    %13 = vsyncpa [#allocation3], 0
    // Predicated region
    $region2: #{tpu_custom_call.1} parent=1 // pred_check
      _
    $region3: #{tpu_custom_call.1} parent=1 // pred_check_branch
      %15 = sbr.rel (0) target = $region5
    $region4: #{tpu_custom_call.1} parent=1 // pred_region
      _
    $region5: #{tpu_custom_call.1} parent=1 // pred_fallthru
      _
    // Predicated region
    $region6: #{tpu_custom_call.1} parent=1 // pred_check
      _
    $region7: #{tpu_custom_call.1} parent=1 // pred_check_branch
      %17 = sbr.rel (0) target = $region9
    $region8: #{tpu_custom_call.1} parent=1 // pred_region
      _
    $region9: #{tpu_custom_call.1} parent=1 // pred_fallthru
      _
    // Predicated region
    $region10: #{tpu_custom_call.1} parent=1 // pred_check
      _
    $region11: #{tpu_custom_call.1} parent=1 // pred_check_branch
      %19 = sbr.rel (0) target = $region13
    $region12: #{tpu_custom_call.1} parent=1 // pred_region
      _
    $region13: #{tpu_custom_call.1} parent=1 // pred_fallthru
      _
    // Predicated region
    $region14: #{tpu_custom_call.1} parent=1 // pred_check
      _
    $region15: #{tpu_custom_call.1} parent=1 // pred_check_branch
      %21 = sbr.rel (0) target = $region17
    $region16: #{tpu_custom_call.1} parent=1 // pred_region
      _
    $region17: #{tpu_custom_call.1} parent=1 // pred_fallthru
      _
    // Predicated region
    $region18: #{tpu_custom_call.1} parent=1 // pred_check
      _
    $region19: #{tpu_custom_call.1} parent=1 // pred_check_branch
      %23 = sbr.rel (0) target = $region21
    $region20: #{tpu_custom_call.1} parent=1 // pred_region
      _
    $region21: #{tpu_custom_call.1} parent=1 // pred_fallthru
      _
    // Predicated region
    $region22: #{tpu_custom_call.1} parent=1 // pred_check
      _
    $region23: #{tpu_custom_call.1} parent=1 // pred_check_branch
      %25 = sbr.rel (0) target = $region25
    $region24: #{tpu_custom_call.1} parent=1 // pred_region
      _
    $region25: #{tpu_custom_call.1} parent=1 // pred_fallthru
      _
    // Predicated region
    $region26: #{tpu_custom_call.1} parent=1 // pred_check
      _
    $region27: #{tpu_custom_call.1} parent=1 // pred_check_branch
      %27 = sbr.rel (0) target = $region29
    $region28: #{tpu_custom_call.1} parent=1 // pred_region
      _
    $region29: #{tpu_custom_call.1} parent=1 // pred_fallthru
      _
    // Predicated region
    $region30: #{tpu_custom_call.1} parent=1 // pred_check
      _
    $region31: #{tpu_custom_call.1} parent=1 // pred_check_branch
      %29 = sbr.rel (0) target = $region33
    $region32: #{tpu_custom_call.1} parent=1 // pred_region
      _
    $region33: #{tpu_custom_call.1} parent=1 // pred_fallthru
      _
    %v30 = vld [vmem:[%s1] sm:$0x3]
    %v31 = vld [vmem:[%s0] sm:$0x3]
    %v32 = vld [vmem:[%s2] sm:$0xff]
    %v33 = vld [vmem:[%s2 + $0x8] sm:$0xff]
    %v34 = vld [vmem:[%s2 + $0x10] sm:$0xff]
    %v35 = vld [vmem:[%s2 + $0x18] sm:$0xff]
    %v36 = vld [vmem:[%s2 + $0x20] sm:$0xff]
    %v37 = vld [vmem:[%s2 + $0x28] sm:$0xff]
    %v38 = vld [vmem:[%s2 + $0x30] sm:$0xff]
    %v39 = vld [vmem:[%s2 + $0x38] sm:$0xff]
    %v40 = vld [vmem:[%s3] sm:$0xff]
    %v41 = vld [vmem:[%s3 + $0x8] sm:$0xff]
    %v42 = vld [vmem:[%s3 + $0x10] sm:$0xff]
    %v43 = vld [vmem:[%s3 + $0x18] sm:$0xff]
    %v44 = vld [vmem:[%s3 + $0x20] sm:$0xff]
    %v45 = vld [vmem:[%s3 + $0x28] sm:$0xff]
    %v46 = vld [vmem:[%s3 + $0x30] sm:$0xff]
    %v47 = vld [vmem:[%s3 + $0x38] sm:$0xff]
    %vm48 = vcmask 261120
    %v50 = vsel %vm48, %v30, 0
    %52 = vmatprep.subr.mxu0 %v41
    %53 = vmatpush1.msra.mxu0 %v40
    %54 = vmatprep.subr.mxu0 %v43
    %55 = vmatpush1.msra.mxu0 %v42
    %56 = vmatprep.subr.mxu0 %v45
    %57 = vmatpush1.msra.mxu0 %v44
    %58 = vmatprep.subr.mxu0 %v47
    %59 = vmatpush1.msra.mxu0 %v46
    %60 = vmatprep.subr.mxu0 0.0
    %61 = vmatpush1.msra.mxu0 0.0
    %62 = vmatprep.subr.mxu0 0.0
    %63 = vmatpush1.msra.mxu0 0.0
    %64 = vmatprep.subr.mxu0 0.0
    %65 = vmatpush1.msra.mxu0 0.0
    %66 = vmatprep.subr.mxu0 0.0
    %67 = vmatpush1.msra.mxu0 0.0
    %68 = vmatprep.subr.mxu0 0.0
    %69 = vmatpush1.msra.mxu0 0.0
    %70 = vmatprep.subr.mxu0 0.0
    %71 = vmatpush1.msra.mxu0 0.0
    %72 = vmatprep.subr.mxu0 0.0
    %73 = vmatpush1.msra.mxu0 0.0
    %74 = vmatprep.subr.mxu0 0.0
    %75 = vmatpush1.msra.mxu0 0.0
    %76 = vmatprep.subr.mxu0 0.0
    %77 = vmatpush1.msra.mxu0 0.0
    %78 = vmatprep.subr.mxu0 0.0
    %79 = vmatpush1.msra.mxu0 0.0
    %80 = vmatprep.subr.mxu0 0.0
    %81 = vmatpush1.msra.mxu0 0.0
    %82 = vmatprep.subr.mxu0 0.0
    %83 = vmatpush1.msra.mxu0 0.0
    %84 = vmatprep.subr.mxu0 0.0
    %85 = vmatpush1.msra.mxu0 0.0
    %86 = vmatprep.subr.mxu0 0.0
    %87 = vmatpush1.msra.mxu0 0.0
    %88 = vmatprep.subr.mxu0 0.0
    %89 = vmatpush1.msra.mxu0 0.0
    %90 = vmatprep.subr.mxu0 0.0
    %91 = vmatpush1.msra.mxu0 0.0
    %92 = vmatprep.subr.mxu0 0.0
    %93 = vmatpush1.msra.mxu0 0.0
    %94 = vmatprep.subr.mxu0 0.0
    %95 = vmatpush1.msra.mxu0 0.0
    %96 = vmatprep.subr.mxu0 0.0
    %97 = vmatpush1.msra.mxu0 0.0
    %98 = vmatprep.subr.mxu0 0.0
    %99 = vmatpush1.msra.mxu0 0.0
    %100 = vmatprep.subr.mxu0 0.0
    %101 = vmatpush1.msra.mxu0 0.0
    %102 = vmatprep.subr.mxu0 0.0
    %103 = vmatpush1.msra.mxu0 0.0
    %104 = vmatprep.subr.mxu0 0.0
    %105 = vmatpush1.msra.mxu0 0.0
    %106 = vmatprep.subr.mxu0 0.0
    %107 = vmatpush1.msra.mxu0 0.0
    %108 = vmatprep.subr.mxu0 0.0
    %109 = vmatpush1.msra.mxu0 0.0
    %110 = vmatprep.subr.mxu0 0.0
    %111 = vmatpush1.msra.mxu0 0.0
    %112 = vmatprep.subr.mxu0 0.0
    %113 = vmatpush1.msra.mxu0 0.0
    %114 = vmatprep.subr.mxu0 0.0
    %115 = vmatpush1.msra.mxu0 0.0
    %116 = vmatprep.mubr.f32.mxu0 0.0
    %117 = vmatmul.mubr.f32.gmra.mrb[0].mxu0 %v50
    %v118 = vpop.f32.mrb[0].mxu0
    %v119 = vadd.f32 0.0, %v118
    %v120 = vpop.f32.mrb[0].mxu0
    %v121 = vadd.f32 0.0, %v120
    %122 = vdwg.mxu0
    %v124 = vsel %vm48, %v31, 0
    %126 = vmatprep.subr.mxu0 %v33
    %127 = vmatpush1.msra.mxu0 %v32
    %128 = vmatprep.subr.mxu0 %v35
    %129 = vmatpush1.msra.mxu0 %v34
    %130 = vmatprep.subr.mxu0 %v37
    %131 = vmatpush1.msra.mxu0 %v36
    %132 = vmatprep.subr.mxu0 %v39
    %133 = vmatpush1.msra.mxu0 %v38
    %134 = vmatprep.subr.mxu0 0.0
    %135 = vmatpush1.msra.mxu0 0.0
    %136 = vmatprep.subr.mxu0 0.0
    %137 = vmatpush1.msra.mxu0 0.0
    %138 = vmatprep.subr.mxu0 0.0
    %139 = vmatpush1.msra.mxu0 0.0
    %140 = vmatprep.subr.mxu0 0.0
    %141 = vmatpush1.msra.mxu0 0.0
    %142 = vmatprep.subr.mxu0 0.0
    %143 = vmatpush1.msra.mxu0 0.0
    %144 = vmatprep.subr.mxu0 0.0
    %145 = vmatpush1.msra.mxu0 0.0
    %146 = vmatprep.subr.mxu0 0.0
    %147 = vmatpush1.msra.mxu0 0.0
    %148 = vmatprep.subr.mxu0 0.0
    %149 = vmatpush1.msra.mxu0 0.0
    %150 = vmatprep.subr.mxu0 0.0
    %151 = vmatpush1.msra.mxu0 0.0
    %152 = vmatprep.subr.mxu0 0.0
    %153 = vmatpush1.msra.mxu0 0.0
    %154 = vmatprep.subr.mxu0 0.0
    %155 = vmatpush1.msra.mxu0 0.0
    %156 = vmatprep.subr.mxu0 0.0
    %157 = vmatpush1.msra.mxu0 0.0
    %158 = vmatprep.subr.mxu0 0.0
    %159 = vmatpush1.msra.mxu0 0.0
    %160 = vmatprep.subr.mxu0 0.0
    %161 = vmatpush1.msra.mxu0 0.0
    %162 = vmatprep.subr.mxu0 0.0
    %163 = vmatpush1.msra.mxu0 0.0
    %164 = vmatprep.subr.mxu0 0.0
    %165 = vmatpush1.msra.mxu0 0.0
    %166 = vmatprep.subr.mxu0 0.0
    %167 = vmatpush1.msra.mxu0 0.0
    %168 = vmatprep.subr.mxu0 0.0
    %169 = vmatpush1.msra.mxu0 0.0
    %170 = vmatprep.subr.mxu0 0.0
    %171 = vmatpush1.msra.mxu0 0.0
    %172 = vmatprep.subr.mxu0 0.0
    %173 = vmatpush1.msra.mxu0 0.0
    %174 = vmatprep.subr.mxu0 0.0
    %175 = vmatpush1.msra.mxu0 0.0
    %176 = vmatprep.subr.mxu0 0.0
    %177 = vmatpush1.msra.mxu0 0.0
    %178 = vmatprep.subr.mxu0 0.0
    %179 = vmatpush1.msra.mxu0 0.0
    %180 = vmatprep.subr.mxu0 0.0
    %181 = vmatpush1.msra.mxu0 0.0
    %182 = vmatprep.subr.mxu0 0.0
    %183 = vmatpush1.msra.mxu0 0.0
    %184 = vmatprep.subr.mxu0 0.0
    %185 = vmatpush1.msra.mxu0 0.0
    %186 = vmatprep.subr.mxu0 0.0
    %187 = vmatpush1.msra.mxu0 0.0
    %188 = vmatprep.subr.mxu0 0.0
    %189 = vmatpush1.msra.mxu0 0.0
    %190 = vmatprep.mubr.f32.mxu0 0.0
    %191 = vmatmul.mubr.f32.gmra.mrb[0].mxu0 %v124
    %v192 = vpop.f32.mrb[0].mxu0
    %v193 = vadd.f32 %v119, %v192
    %v194 = vpop.f32.mrb[0].mxu0
    %v195 = vadd.f32 %v121, %v194
    %196 = vdwg.mxu0
    %v197 = vld [vmem:[%s4] sm:$0x3]
    %v199 = vlaneseq
    %v200 = vshrl.u32 %v199, 7
    %v201 = vsub.s32 0, %v200
    %v202 = vrot.slane %v197, %v201
    %v203 = vlaneseq
    %v204 = vshrl.u32 %v203, 7
    %v205 = vsub.s32 1, %v204
    %v206 = vrot.slane %v197, %v205
    %v209 = vadd.f32 %v193, %v202
    %v210 = vadd.f32 %v195, %v206
    %v211 = vxor.u32 %v209, 2147483648
    %v212 = vxor.u32 %v210, 2147483648
    %v213 = vmul.f32 %v211, 1.442695
    %v214 = vpow.pop %v213
    %v215 = vmul.f32 %v212, 1.442695
    %v216 = vpow.pop %v215
    %v217 = vadd.f32 %v214, 1.0
    %v218 = vadd.f32 %v216, 1.0
    %v219 = vrcp.pop %v217
    %v220 = vmul.f32 1.0, %v219
    %v221 = vrcp.pop %v218
    %v222 = vmul.f32 1.0, %v221
    %v223 = vld [vmem:[%s5] sm:$0xff]
    %v224 = vld [vmem:[%s5 + $0x8] sm:$0xff]
    %v225 = vld [vmem:[%s5 + $0x10] sm:$0xff]
    %v226 = vld [vmem:[%s5 + $0x18] sm:$0xff]
    %v227 = vld [vmem:[%s5 + $0x20] sm:$0xff]
    %v228 = vld [vmem:[%s5 + $0x28] sm:$0xff]
    %v229 = vld [vmem:[%s5 + $0x30] sm:$0xff]
    %v230 = vld [vmem:[%s5 + $0x38] sm:$0xff]
    %v231 = vld [vmem:[%s5 + $0x40] sm:$0xff]
    %v232 = vld [vmem:[%s5 + $0x48] sm:$0xff]
    %v233 = vld [vmem:[%s5 + $0x50] sm:$0xff]
    %v234 = vld [vmem:[%s5 + $0x58] sm:$0xff]
    %v235 = vld [vmem:[%s5 + $0x60] sm:$0xff]
    %v236 = vld [vmem:[%s5 + $0x68] sm:$0xff]
    %v237 = vld [vmem:[%s5 + $0x70] sm:$0xff]
    %v238 = vld [vmem:[%s5 + $0x78] sm:$0xff]
    %v239 = vld [vmem:[%s5 + $0x80] sm:$0xff]
    %v240 = vld [vmem:[%s5 + $0x88] sm:$0xff]
    %v241 = vld [vmem:[%s6] sm:$0xff]
    %v242 = vld [vmem:[%s6 + $0x8] sm:$0xff]
    %v243 = vld [vmem:[%s6 + $0x10] sm:$0xff]
    %v244 = vld [vmem:[%s6 + $0x18] sm:$0xff]
    %245 = vmatprep.subr.mxu0 0.0
    %246 = vmatpush1.msra.mxu0 %v241
    %247 = vmatprep.subr.mxu0 0.0
    %248 = vmatpush1.msra.mxu0 %v242
    %249 = vmatprep.subr.mxu0 0.0
    %250 = vmatpush1.msra.mxu0 %v243
    %251 = vmatprep.subr.mxu0 0.0
    %252 = vmatpush1.msra.mxu0 %v244
    %253 = vmatprep.subr.mxu0 0.0
    %254 = vmatpush1.msra.mxu0 0.0
    %255 = vmatprep.subr.mxu0 0.0
    %256 = vmatpush1.msra.mxu0 0.0
    %257 = vmatprep.subr.mxu0 0.0
    %258 = vmatpush1.msra.mxu0 0.0
    %259 = vmatprep.subr.mxu0 0.0
    %260 = vmatpush1.msra.mxu0 0.0
    %261 = vmatprep.subr.mxu0 0.0
    %262 = vmatpush1.msra.mxu0 0.0
    %263 = vmatprep.subr.mxu0 0.0
    %264 = vmatpush1.msra.mxu0 0.0
    %265 = vmatprep.subr.mxu0 0.0
    %266 = vmatpush1.msra.mxu0 0.0
    %267 = vmatprep.subr.mxu0 0.0
    %268 = vmatpush1.msra.mxu0 0.0
    %269 = vmatprep.subr.mxu0 0.0
    %270 = vmatpush1.msra.mxu0 0.0
    %271 = vmatprep.subr.mxu0 0.0
    %272 = vmatpush1.msra.mxu0 0.0
    %273 = vmatprep.subr.mxu0 0.0
    %274 = vmatpush1.msra.mxu0 0.0
    %275 = vmatprep.subr.mxu0 0.0
    %276 = vmatpush1.msra.mxu0 0.0
    %277 = vmatprep.subr.mxu0 0.0
    %278 = vmatpush1.msra.mxu0 0.0
    %279 = vmatprep.subr.mxu0 0.0
    %280 = vmatpush1.msra.mxu0 0.0
    %281 = vmatprep.subr.mxu0 0.0
    %282 = vmatpush1.msra.mxu0 0.0
    %283 = vmatprep.subr.mxu0 0.0
    %284 = vmatpush1.msra.mxu0 0.0
    %285 = vmatprep.subr.mxu0 0.0
    %286 = vmatpush1.msra.mxu0 0.0
    %287 = vmatprep.subr.mxu0 0.0
    %288 = vmatpush1.msra.mxu0 0.0
    %289 = vmatprep.subr.mxu0 0.0
    %290 = vmatpush1.msra.mxu0 0.0
    %291 = vmatprep.subr.mxu0 0.0
    %292 = vmatpush1.msra.mxu0 0.0
    %293 = vmatprep.subr.mxu0 0.0
    %294 = vmatpush1.msra.mxu0 0.0
    %295 = vmatprep.subr.mxu0 0.0
    %296 = vmatpush1.msra.mxu0 0.0
    %297 = vmatprep.subr.mxu0 0.0
    %298 = vmatpush1.msra.mxu0 0.0
    %299 = vmatprep.subr.mxu0 0.0
    %300 = vmatpush1.msra.mxu0 0.0
    %301 = vmatprep.subr.mxu0 0.0
    %302 = vmatpush1.msra.mxu0 0.0
    %303 = vmatprep.subr.mxu0 0.0
    %304 = vmatpush1.msra.mxu0 0.0
    %305 = vmatprep.subr.mxu0 0.0
    %306 = vmatpush1.msra.mxu0 0.0
    %307 = vmatprep.subr.mxu0 0.0
    %308 = vmatpush1.msra.mxu0 0.0
    %309 = vmatprep.mubr.f32.mxu0 0.0
    %310 = vmatmul.mubr.f32.gmra.mrb[0].mxu0 %v50
    %v311 = vpop.f32.mrb[0].mxu0
    %v312 = vadd.f32 0.0, %v311
    %v313 = vpop.f32.mrb[0].mxu0
    %314 = vdwg.mxu0
    %vm315 = vcmask 130048
    %v317 = vsel %vm315, %v222, 0
    %319 = vmatprep.subr.mxu0 0.0
    %320 = vmatpush1.msra.mxu0 %v223
    %321 = vmatprep.subr.mxu0 0.0
    %322 = vmatpush1.msra.mxu0 %v224
    %323 = vmatprep.subr.mxu0 0.0
    %324 = vmatpush1.msra.mxu0 %v225
    %325 = vmatprep.subr.mxu0 0.0
    %326 = vmatpush1.msra.mxu0 %v226
    %327 = vmatprep.subr.mxu0 0.0
    %328 = vmatpush1.msra.mxu0 %v227
    %329 = vmatprep.subr.mxu0 0.0
    %330 = vmatpush1.msra.mxu0 %v228
    %331 = vmatprep.subr.mxu0 0.0
    %332 = vmatpush1.msra.mxu0 %v229
    %333 = vmatprep.subr.mxu0 0.0
    %334 = vmatpush1.msra.mxu0 %v230
    %335 = vmatprep.subr.mxu0 0.0
    %336 = vmatpush1.msra.mxu0 %v231
    %337 = vmatprep.subr.mxu0 0.0
    %338 = vmatpush1.msra.mxu0 %v232
    %339 = vmatprep.subr.mxu0 0.0
    %340 = vmatpush1.msra.mxu0 %v233
    %341 = vmatprep.subr.mxu0 0.0
    %342 = vmatpush1.msra.mxu0 %v234
    %343 = vmatprep.subr.mxu0 0.0
    %344 = vmatpush1.msra.mxu0 %v235
    %345 = vmatprep.subr.mxu0 0.0
    %346 = vmatpush1.msra.mxu0 %v236
    %347 = vmatprep.subr.mxu0 0.0
    %348 = vmatpush1.msra.mxu0 %v237
    %349 = vmatprep.subr.mxu0 0.0
    %350 = vmatpush1.msra.mxu0 %v238
    %351 = vmatprep.subr.mxu0 0.0
    %352 = vmatpush1.msra.mxu0 %v239
    %353 = vmatprep.subr.mxu0 0.0
    %354 = vmatpush1.msra.mxu0 %v240
    %355 = vmatprep.subr.mxu0 0.0
    %356 = vmatpush1.msra.mxu0 0.0
    %357 = vmatprep.subr.mxu0 0.0
    %358 = vmatpush1.msra.mxu0 0.0
    %359 = vmatprep.subr.mxu0 0.0
    %360 = vmatpush1.msra.mxu0 0.0
    %361 = vmatprep.subr.mxu0 0.0
    %362 = vmatpush1.msra.mxu0 0.0
    %363 = vmatprep.subr.mxu0 0.0
    %364 = vmatpush1.msra.mxu0 0.0
    %365 = vmatprep.subr.mxu0 0.0
    %366 = vmatpush1.msra.mxu0 0.0
    %367 = vmatprep.subr.mxu0 0.0
    %368 = vmatpush1.msra.mxu0 0.0
    %369 = vmatprep.subr.mxu0 0.0
    %370 = vmatpush1.msra.mxu0 0.0
    %371 = vmatprep.subr.mxu0 0.0
    %372 = vmatpush1.msra.mxu0 0.0
    %373 = vmatprep.subr.mxu0 0.0
    %374 = vmatpush1.msra.mxu0 0.0
    %375 = vmatprep.subr.mxu0 0.0
    %376 = vmatpush1.msra.mxu0 0.0
    %377 = vmatprep.subr.mxu0 0.0
    %378 = vmatpush1.msra.mxu0 0.0
    %379 = vmatprep.subr.mxu0 0.0
    %380 = vmatpush1.msra.mxu0 0.0
    %381 = vmatprep.subr.mxu0 0.0
    %382 = vmatpush1.msra.mxu0 0.0
    %383 = vmatprep.mubr.f32.mxu0 %v317
    %384 = vmatmul.mubr.f32.gmra.mrb[0].mxu0 %v220
    %v385 = vpop.f32.mrb[0].mxu0
    %v386 = vadd.f32 %v312, %v385
    %v387 = vpop.f32.mrb[0].mxu0
    %388 = vdwg.mxu0
    %v389 = vld [vmem:[%s7] sm:$0x1]
    %v391 = vlaneseq
    %v392 = vshrl.u32 %v391, 7
    %v393 = vsub.s32 0, %v392
    %v394 = vrot.slane %v389, %v393
    %v396 = vadd.f32 %v386, %v394
    %vm397 = vcmask 320512
    %398 = vst.msk [vmem:[#allocation2] sm:$0x3] %vm397, %v396
    // Predicated region
    $region34: #{tpu_custom_call.1} parent=1 // pred_check
      _
    $region35: #{tpu_custom_call.1} parent=1 // pred_check_branch
      %400 = sbr.rel (0) target = $region37
    $region36: #{tpu_custom_call.1} parent=1 // pred_region
      %s402 = ssub.s32 32, 32
      %403 = vsyncadd [#allocation3], %s402
      %s405 = sshll.u32 [#allocation2], 4
      %s406 = int_to_ptr.vmem [resolvable:$true] %s405
      %408 = dma.vmem_to_hbm [thread:$0]  %s406, 32, %s8, [#allocation3]
    $region37: #{tpu_custom_call.1} parent=1 // pred_fallthru
      _
    // Predicated region
    $region38: #{tpu_custom_call.1} parent=1 // pred_check
      _
    $region39: #{tpu_custom_call.1} parent=1 // pred_check_branch
      %410 = sbr.rel (0) target = $region41
    $region40: #{tpu_custom_call.1} parent=1 // pred_region
      %411 = dma.done [#allocation3], 32
    $region41: #{tpu_custom_call.1} parent=1 // pred_fallthru
      _
    %412 = vsyncpa [#allocation3], 1

</llo_original>
